<compile_context>
chip_gen: v5e
topology: v5e:2x2
jax: 0.10.0
libtpu: 0.0.40
codegen_flags: <defaults>
</compile_context>

<pallas_src>
import functools

import jax
import jax.numpy as jnp
import numpy as np
from jax.experimental import pallas as pl
from jax.experimental.pallas import tpu as pltpu


# -----------------------------------------------------------------------------
# Fused Pallas kernel: conv1 -> elu -> conv2 -> log_softmax
# -----------------------------------------------------------------------------
def _net_kernel(x_ref, src_ref, tgt_ref, wmul_ref,
                w1_ref, b1_ref, wm1a_ref, wm2a_ref, bm2a_ref,
                w2_ref, b2_ref, wm1b_ref, wm2b_ref, bm2b_ref,
                o_ref, *, num_classes):
    f32 = jnp.float32
    E = src_ref.shape[0]
    N = x_ref.shape[0]

    # One-hot gather/scatter operands built in VMEM from the edge index.
    src = src_ref[...]                                                   # (E, 1) i32
    tgt = tgt_ref[...]                                                   # (1, E) i32
    gather = jnp.where(                                                  # [E, N]: gather @ h == h[src]
        jax.lax.broadcasted_iota(jnp.int32, (E, N), 1) == src,
        1.0, 0.0).astype(f32)
    scatter = jnp.where(                                                 # [N, E]: scatter @ m == segment_sum(m, tgt)
        jax.lax.broadcasted_iota(jnp.int32, (N, E), 0) == tgt,
        1.0, 0.0).astype(f32)

    w_mul = wmul_ref[...]                                                # (E, 1) f32

    def mm(a, b):
        # f32 MXU matmul with f32 accumulation (flip operands to bf16 for
        # large graphs; at these shapes f32 keeps validation tight).
        return jnp.dot(a, b, preferred_element_type=f32)

    def curvgn(h_in, W, b, wm1, wm2, bm2):
        # node feature transform: [N, Fin] @ [Fin, C]
        h = mm(h_in, W) + b                                              # [N, C]
        # edge MLP: Linear(1, C, bias=False) -> LeakyReLU(0.2) -> Linear(C, C)
        z = w_mul * wm1                                                  # [E, C] outer product
        z = jnp.where(z > 0, z, 0.2 * z)
        logits = mm(z, wm2) + bm2                                        # [E, C]
        # Per-(target, channel) softmax over incoming edges.  The shift uses the
        # per-channel *global* max (softmax is shift invariant within each target
        # segment); normalization happens after aggregation.
        m = jnp.max(logits, axis=0, keepdims=True)                       # [1, C]
        e = jnp.exp(logits - m)                                          # [E, C]
        h_src = mm(gather, h)                                            # [E, C] == h[src]
        num = mm(scatter, e * h_src)                                     # [N, C]
        den = mm(scatter, e)                                             # [N, C]
        return num * pl.reciprocal(jnp.maximum(den, 1e-30), approx=True)

    # conv1 + ELU   (F.dropout with training=False is identity)
    h1 = curvgn(x_ref[...], w1_ref[...], b1_ref[...],
                wm1a_ref[...], wm2a_ref[...], bm2a_ref[...])
    h1 = jnp.where(h1 > 0, h1, jnp.exp(h1) - 1.0)

    # conv2 (class dim zero-padded to lane-dense width) + masked log_softmax
    h2 = curvgn(h1, w2_ref[...], b2_ref[...],
                wm1b_ref[...], wm2b_ref[...], bm2b_ref[...])
    CP = h2.shape[1]
    valid = jax.lax.broadcasted_iota(jnp.int32, (N, CP), 1) < num_classes
    h2 = jnp.where(valid, h2, -1e30)
    mx = jnp.max(h2, axis=1, keepdims=True)
    sh = h2 - mx
    lse = jnp.log(jnp.sum(jnp.where(valid, jnp.exp(sh), 0.0),
                          axis=1, keepdims=True))
    o_ref[...] = sh - lse


def net_forward_pallas(x, params, src, tgt, w_mul, num_classes):
    N, F_in = x.shape
    E = w_mul.shape[0]
    p1, p2 = params["conv1"], params["conv2"]
    C1 = p1["W"].shape[1]
    CP = pl.cdiv(max(num_classes, 1), 128) * 128   # lane-dense padded class width

    def padc(a):
        return jnp.pad(a, ((0, 0), (0, CP - a.shape[1])))

    # Zero-padding the conv2 weights keeps the real-class results bit-identical
    # (padded channels stay exactly 0 and are masked before log_softmax).
    W2 = padc(p2["W"])
    b2 = padc(p2["b"])
    wm1b = padc(p2["wm1"])
    bm2b = padc(p2["bm2"])
    wm2b = jnp.pad(p2["wm2"], ((0, CP - p2["wm2"].shape[0]),
                               (0, CP - p2["wm2"].shape[1])))

    src2 = src.reshape(E, 1).astype(jnp.int32)
    tgt2 = tgt.reshape(1, E).astype(jnp.int32)

    def full(shape):
        return pl.BlockSpec(shape, lambda i: (0,) * len(shape))

    kernel = functools.partial(_net_kernel, num_classes=num_classes)
    out = pl.pallas_call(
        kernel,
        out_shape=jax.ShapeDtypeStruct((N, CP), jnp.float32),
        grid=(1,),
        in_specs=[
            full((N, F_in)),                               # x
            full((E, 1)), full((1, E)),                    # src, tgt
            full((E, 1)),                                  # w_mul
            full((F_in, C1)), full((1, C1)),               # conv1 W, b
            full((1, C1)), full((C1, C1)), full((1, C1)),  # conv1 edge MLP
            full((C1, CP)), full((1, CP)),                 # conv2 W, b (padded)
            full((1, CP)), full((CP, CP)), full((1, CP)),  # conv2 edge MLP (padded)
        ],
        out_specs=full((N, CP)),
        compiler_params=pltpu.CompilerParams(
            dimension_semantics=("arbitrary",)),
    )(x, src2, tgt2, w_mul,
      p1["W"], p1["b"], p1["wm1"], p1["wm2"], p1["bm2"],
      W2, b2, wm1b, wm2b, bm2b)
    return out[:, :num_classes]


# -----------------------------------------------------------------------------
# Pure-JAX reference (segment ops) for validation
# -----------------------------------------------------------------------------
def net_forward_reference(x, params, src, tgt, w_mul, N):
    def layer(h, p):
        hh = h @ p["W"] + p["b"]
        z = w_mul * p["wm1"]
        z = jnp.where(z > 0, z, 0.2 * z)
        logits = z @ p["wm2"] + p["bm2"]                       # [E, C]
        m = jax.ops.segment_max(logits, tgt, num_segments=N)
        e = jnp.exp(logits - m[tgt])
        s = jax.ops.segment_sum(e, tgt, num_segments=N)
        attn = e / s[tgt]
        return jax.ops.segment_sum(attn * hh[src], tgt, num_segments=N)

    h1 = layer(x, params["conv1"])
    h1 = jnp.where(h1 > 0, h1, jnp.exp(h1) - 1.0)              # elu
    h2 = layer(h1, params["conv2"])
    return jax.nn.log_softmax(h2, axis=1)


# -----------------------------------------------------------------------------
# Deterministic parameter init (PyTorch Linear default: U(-1/sqrt(fan_in), ...))
# -----------------------------------------------------------------------------
def init_curvgn_params(key, in_ch, out_ch):
    k1, k2, k3, k4, k5 = jax.random.split(key, 5)
    bl = 1.0 / np.sqrt(in_ch)
    bm = 1.0 / np.sqrt(out_ch)
    return {
        "W": jax.random.uniform(k1, (in_ch, out_ch), jnp.float32, -bl, bl),
        "b": jax.random.uniform(k2, (1, out_ch), jnp.float32, -bl, bl),
        "wm1": jax.random.uniform(k3, (1, out_ch), jnp.float32, -1.0, 1.0),
        "wm2": jax.random.uniform(k4, (out_ch, out_ch), jnp.float32, -bm, bm),
        "bm2": jax.random.uniform(k5, (1, out_ch), jnp.float32, -bm, bm),
    }


if __name__ == "__main__":
    N, F_IN, HIDDEN, NUM_CLASSES = 16, 16, 64, 8

    # deterministic edge set: self-loops + two ring offsets (no duplicate edges)
    ids = np.arange(N)
    src_np = np.concatenate([ids, ids, ids]).astype(np.int32)
    tgt_np = np.concatenate([ids, (ids + 1) % N, (ids + 3) % N]).astype(np.int32)
    E = src_np.shape[0]
    src = jnp.asarray(src_np)
    tgt = jnp.asarray(tgt_np)
    edge_index = jnp.stack([src, tgt])  # PyG convention: [2, E]

    key = jax.random.PRNGKey(0)
    kx, kw, k1, k2 = jax.random.split(key, 4)
    x = jax.random.normal(kx, (N, F_IN), jnp.float32)
    w_mul = jax.random.normal(kw, (E, 1), jnp.float32)  # "Randn" baseline curvature

    params = {
        "conv1": init_curvgn_params(k1, F_IN, HIDDEN),
        "conv2": init_curvgn_params(k2, HIDDEN, NUM_CLASSES),
    }

    # TODO(synk): training-mode F.dropout (stochastic) not implemented; eval mode only.
    out = net_forward_pallas(x, params, src, tgt, w_mul, NUM_CLASSES)
    out = jax.block_until_ready(out)

    ref = net_forward_reference(x, params, src, tgt, w_mul, N)
    np.testing.assert_allclose(np.asarray(out), np.asarray(ref), rtol=2e-2, atol=2e-2)

    print("KERNEL_OK")
</pallas_src>

<mosaic_0001>
module attributes {stable_mosaic.version = 11 : i64} {
  func.func @_net_kernel(%arg0: i32, %arg1: memref<16x16xf32, #tpu.memory_space<vmem>>, %arg2: memref<48x1xi32, #tpu.memory_space<vmem>>, %arg3: memref<1x48xi32, #tpu.memory_space<vmem>>, %arg4: memref<48x1xf32, #tpu.memory_space<vmem>>, %arg5: memref<16x64xf32, #tpu.memory_space<vmem>>, %arg6: memref<1x64xf32, #tpu.memory_space<vmem>>, %arg7: memref<1x64xf32, #tpu.memory_space<vmem>>, %arg8: memref<64x64xf32, #tpu.memory_space<vmem>>, %arg9: memref<1x64xf32, #tpu.memory_space<vmem>>, %arg10: memref<64x128xf32, #tpu.memory_space<vmem>>, %arg11: memref<1x128xf32, #tpu.memory_space<vmem>>, %arg12: memref<1x128xf32, #tpu.memory_space<vmem>>, %arg13: memref<128x128xf32, #tpu.memory_space<vmem>>, %arg14: memref<1x128xf32, #tpu.memory_space<vmem>>, %arg15: memref<16x128xf32, #tpu.memory_space<vmem>>) attributes {dimension_semantics = [#tpu.dimension_semantics<arbitrary>], iteration_bounds = array<i64: 1>, scalar_prefetch = 0 : i64, scratch_operands = 0 : i64, tpu.core_type = #tpu.core_type<tc>, window_params = [{pipeline_mode = #tpu.pipeline_mode<synchronous>, transform_indices = @transform_0, window_bounds = array<i64: 16, 16>}, {pipeline_mode = #tpu.pipeline_mode<synchronous>, transform_indices = @transform_1, window_bounds = array<i64: 48, 1>}, {pipeline_mode = #tpu.pipeline_mode<synchronous>, transform_indices = @transform_2, window_bounds = array<i64: 1, 48>}, {pipeline_mode = #tpu.pipeline_mode<synchronous>, transform_indices = @transform_3, window_bounds = array<i64: 48, 1>}, {pipeline_mode = #tpu.pipeline_mode<synchronous>, transform_indices = @transform_4, window_bounds = array<i64: 16, 64>}, {pipeline_mode = #tpu.pipeline_mode<synchronous>, transform_indices = @transform_5, window_bounds = array<i64: 1, 64>}, {pipeline_mode = #tpu.pipeline_mode<synchronous>, transform_indices = @transform_6, window_bounds = array<i64: 1, 64>}, {pipeline_mode = #tpu.pipeline_mode<synchronous>, transform_indices = @transform_7, window_bounds = array<i64: 64, 64>}, {pipeline_mode = #tpu.pipeline_mode<synchronous>, transform_indices = @transform_8, window_bounds = array<i64: 1, 64>}, {pipeline_mode = #tpu.pipeline_mode<synchronous>, transform_indices = @transform_9, window_bounds = array<i64: 64, 128>}, {pipeline_mode = #tpu.pipeline_mode<synchronous>, transform_indices = @transform_10, window_bounds = array<i64: 1, 128>}, {pipeline_mode = #tpu.pipeline_mode<synchronous>, transform_indices = @transform_11, window_bounds = array<i64: 1, 128>}, {pipeline_mode = #tpu.pipeline_mode<synchronous>, transform_indices = @transform_12, window_bounds = array<i64: 128, 128>}, {pipeline_mode = #tpu.pipeline_mode<synchronous>, transform_indices = @transform_13, window_bounds = array<i64: 1, 128>}, {pipeline_mode = #tpu.pipeline_mode<synchronous>, transform_indices = @transform_14, window_bounds = array<i64: 16, 128>}]} {
    %c0 = arith.constant 0 : index
    %c0_0 = arith.constant 0 : index
    %0 = vector.load %arg2[%c0, %c0_0] : memref<48x1xi32, #tpu.memory_space<vmem>>, vector<48x1xi32>
    %c0_1 = arith.constant 0 : index
    %c0_2 = arith.constant 0 : index
    %1 = vector.load %arg3[%c0_1, %c0_2] : memref<1x48xi32, #tpu.memory_space<vmem>>, vector<1x48xi32>
    %2 = tpu.iota {dimensions = array<i32: 1>} : vector<48x16xi32>
    %3 = vector.broadcast %0 : vector<48x1xi32> to vector<48x16xi32>
    %4 = arith.cmpi eq, %2, %3 : vector<48x16xi32>
    %cst = arith.constant 1.000000e+00 : f32
    %cst_3 = arith.constant 0.000000e+00 : f32
    %5 = vector.broadcast %cst : f32 to vector<48x16xf32>
    %6 = vector.broadcast %cst_3 : f32 to vector<48x16xf32>
    %7 = arith.select %4, %5, %6 : vector<48x16xi1>, vector<48x16xf32>
    %8 = tpu.iota {dimensions = array<i32: 0>} : vector<16x48xi32>
    %9 = vector.broadcast %1 : vector<1x48xi32> to vector<16x48xi32>
    %10 = arith.cmpi eq, %8, %9 : vector<16x48xi32>
    %cst_4 = arith.constant 1.000000e+00 : f32
    %cst_5 = arith.constant 0.000000e+00 : f32
    %11 = vector.broadcast %cst_4 : f32 to vector<16x48xf32>
    %12 = vector.broadcast %cst_5 : f32 to vector<16x48xf32>
    %13 = arith.select %10, %11, %12 : vector<16x48xi1>, vector<16x48xf32>
    %c0_6 = arith.constant 0 : index
    %c0_7 = arith.constant 0 : index
    %14 = vector.load %arg4[%c0_6, %c0_7] : memref<48x1xf32, #tpu.memory_space<vmem>>, vector<48x1xf32>
    %c0_8 = arith.constant 0 : index
    %c0_9 = arith.constant 0 : index
    %15 = vector.load %arg1[%c0_8, %c0_9] : memref<16x16xf32, #tpu.memory_space<vmem>>, vector<16x16xf32>
    %c0_10 = arith.constant 0 : index
    %c0_11 = arith.constant 0 : index
    %16 = vector.load %arg5[%c0_10, %c0_11] : memref<16x64xf32, #tpu.memory_space<vmem>>, vector<16x64xf32>
    %c0_12 = arith.constant 0 : index
    %c0_13 = arith.constant 0 : index
    %17 = vector.load %arg6[%c0_12, %c0_13] : memref<1x64xf32, #tpu.memory_space<vmem>>, vector<1x64xf32>
    %c0_14 = arith.constant 0 : index
    %c0_15 = arith.constant 0 : index
    %18 = vector.load %arg7[%c0_14, %c0_15] : memref<1x64xf32, #tpu.memory_space<vmem>>, vector<1x64xf32>
    %c0_16 = arith.constant 0 : index
    %c0_17 = arith.constant 0 : index
    %19 = vector.load %arg8[%c0_16, %c0_17] : memref<64x64xf32, #tpu.memory_space<vmem>>, vector<64x64xf32>
    %c0_18 = arith.constant 0 : index
    %c0_19 = arith.constant 0 : index
    %20 = vector.load %arg9[%c0_18, %c0_19] : memref<1x64xf32, #tpu.memory_space<vmem>>, vector<1x64xf32>
    %cst_20 = arith.constant dense<0.000000e+00> : vector<16x64xf32>
    %21 = tpu.matmul %15, %16, %cst_20 {dimension_numbers = #tpu.dot_dimension_numbers<[1], [0], [0], [1], [0, 0, 1, 1], [], []>} : vector<16x16xf32>, vector<16x64xf32>, vector<16x64xf32> -> vector<16x64xf32>
    %22 = vector.broadcast %17 : vector<1x64xf32> to vector<16x64xf32>
    %23 = arith.addf %21, %22 : vector<16x64xf32>
    %24 = vector.broadcast %14 : vector<48x1xf32> to vector<48x64xf32>
    %25 = vector.broadcast %18 : vector<1x64xf32> to vector<48x64xf32>
    %26 = arith.mulf %24, %25 : vector<48x64xf32>
    %cst_21 = arith.constant 0.000000e+00 : f32
    %27 = vector.broadcast %cst_21 : f32 to vector<48x64xf32>
    %28 = arith.cmpf ogt, %26, %27 : vector<48x64xf32>
    %cst_22 = arith.constant 2.000000e-01 : f32
    %29 = vector.broadcast %cst_22 : f32 to vector<48x64xf32>
    %30 = arith.mulf %29, %26 : vector<48x64xf32>
    %31 = arith.select %28, %26, %30 : vector<48x64xi1>, vector<48x64xf32>
    %cst_23 = arith.constant dense<0.000000e+00> : vector<48x64xf32>
    %32 = tpu.matmul %31, %19, %cst_23 {dimension_numbers = #tpu.dot_dimension_numbers<[1], [0], [0], [1], [0, 0, 1, 1], [], []>} : vector<48x64xf32>, vector<64x64xf32>, vector<48x64xf32> -> vector<48x64xf32>
    %33 = vector.broadcast %20 : vector<1x64xf32> to vector<48x64xf32>
    %34 = arith.addf %32, %33 : vector<48x64xf32>
    %cst_24 = arith.constant dense<0xFF800000> : vector<64xf32>
    %35 = vector.multi_reduction <maximumf>, %34, %cst_24 [0] : vector<48x64xf32> to vector<64xf32>
    %36 = vector.shape_cast %35 : vector<64xf32> to vector<1x64xf32>
    %37 = vector.broadcast %36 : vector<1x64xf32> to vector<48x64xf32>
    %38 = arith.subf %34, %37 : vector<48x64xf32>
    %39 = math.exp %38 : vector<48x64xf32>
    %cst_25 = arith.constant dense<0.000000e+00> : vector<48x64xf32>
    %40 = tpu.matmul %7, %23, %cst_25 {dimension_numbers = #tpu.dot_dimension_numbers<[1], [0], [0], [1], [0, 0, 1, 1], [], []>} : vector<48x16xf32>, vector<16x64xf32>, vector<48x64xf32> -> vector<48x64xf32>
    %41 = arith.mulf %39, %40 : vector<48x64xf32>
    %cst_26 = arith.constant dense<0.000000e+00> : vector<16x64xf32>
    %42 = tpu.matmul %13, %41, %cst_26 {dimension_numbers = #tpu.dot_dimension_numbers<[1], [0], [0], [1], [0, 0, 1, 1], [], []>} : vector<16x48xf32>, vector<48x64xf32>, vector<16x64xf32> -> vector<16x64xf32>
    %cst_27 = arith.constant dense<0.000000e+00> : vector<16x64xf32>
    %43 = tpu.matmul %13, %39, %cst_27 {dimension_numbers = #tpu.dot_dimension_numbers<[1], [0], [0], [1], [0, 0, 1, 1], [], []>} : vector<16x48xf32>, vector<48x64xf32>, vector<16x64xf32> -> vector<16x64xf32>
    %cst_28 = arith.constant 1.000000e-30 : f32
    %44 = vector.broadcast %cst_28 : f32 to vector<16x64xf32>
    %45 = arith.maximumf %43, %44 : vector<16x64xf32>
    %46 = tpu.reciprocal %45 {approx = true} : vector<16x64xf32> -> vector<16x64xf32>
    %47 = arith.mulf %42, %46 : vector<16x64xf32>
    %cst_29 = arith.constant 0.000000e+00 : f32
    %48 = vector.broadcast %cst_29 : f32 to vector<16x64xf32>
    %49 = arith.cmpf ogt, %47, %48 : vector<16x64xf32>
    %50 = math.exp %47 : vector<16x64xf32>
    %cst_30 = arith.constant 1.000000e+00 : f32
    %51 = vector.broadcast %cst_30 : f32 to vector<16x64xf32>
    %52 = arith.subf %50, %51 : vector<16x64xf32>
    %53 = arith.select %49, %47, %52 : vector<16x64xi1>, vector<16x64xf32>
    %c0_31 = arith.constant 0 : index
    %c0_32 = arith.constant 0 : index
    %54 = vector.load %arg10[%c0_31, %c0_32] : memref<64x128xf32, #tpu.memory_space<vmem>>, vector<64x128xf32>
    %c0_33 = arith.constant 0 : index
    %c0_34 = arith.constant 0 : index
    %55 = vector.load %arg11[%c0_33, %c0_34] : memref<1x128xf32, #tpu.memory_space<vmem>>, vector<1x128xf32>
    %c0_35 = arith.constant 0 : index
    %c0_36 = arith.constant 0 : index
    %56 = vector.load %arg12[%c0_35, %c0_36] : memref<1x128xf32, #tpu.memory_space<vmem>>, vector<1x128xf32>
    %c0_37 = arith.constant 0 : index
    %c0_38 = arith.constant 0 : index
    %57 = vector.load %arg13[%c0_37, %c0_38] : memref<128x128xf32, #tpu.memory_space<vmem>>, vector<128x128xf32>
    %c0_39 = arith.constant 0 : index
    %c0_40 = arith.constant 0 : index
    %58 = vector.load %arg14[%c0_39, %c0_40] : memref<1x128xf32, #tpu.memory_space<vmem>>, vector<1x128xf32>
    %cst_41 = arith.constant dense<0.000000e+00> : vector<16x128xf32>
    %59 = tpu.matmul %53, %54, %cst_41 {dimension_numbers = #tpu.dot_dimension_numbers<[1], [0], [0], [1], [0, 0, 1, 1], [], []>} : vector<16x64xf32>, vector<64x128xf32>, vector<16x128xf32> -> vector<16x128xf32>
    %60 = vector.broadcast %55 : vector<1x128xf32> to vector<16x128xf32>
    %61 = arith.addf %59, %60 : vector<16x128xf32>
    %62 = vector.broadcast %14 : vector<48x1xf32> to vector<48x128xf32>
    %63 = vector.broadcast %56 : vector<1x128xf32> to vector<48x128xf32>
    %64 = arith.mulf %62, %63 : vector<48x128xf32>
    %cst_42 = arith.constant 0.000000e+00 : f32
    %65 = vector.broadcast %cst_42 : f32 to vector<48x128xf32>
    %66 = arith.cmpf ogt, %64, %65 : vector<48x128xf32>
    %cst_43 = arith.constant 2.000000e-01 : f32
    %67 = vector.broadcast %cst_43 : f32 to vector<48x128xf32>
    %68 = arith.mulf %67, %64 : vector<48x128xf32>
    %69 = arith.select %66, %64, %68 : vector<48x128xi1>, vector<48x128xf32>
    %cst_44 = arith.constant dense<0.000000e+00> : vector<48x128xf32>
    %70 = tpu.matmul %69, %57, %cst_44 {dimension_numbers = #tpu.dot_dimension_numbers<[1], [0], [0], [1], [0, 0, 1, 1], [], []>} : vector<48x128xf32>, vector<128x128xf32>, vector<48x128xf32> -> vector<48x128xf32>
    %71 = vector.broadcast %58 : vector<1x128xf32> to vector<48x128xf32>
    %72 = arith.addf %70, %71 : vector<48x128xf32>
    %cst_45 = arith.constant dense<0xFF800000> : vector<128xf32>
    %73 = vector.multi_reduction <maximumf>, %72, %cst_45 [0] : vector<48x128xf32> to vector<128xf32>
    %74 = vector.shape_cast %73 : vector<128xf32> to vector<1x128xf32>
    %75 = vector.broadcast %74 : vector<1x128xf32> to vector<48x128xf32>
    %76 = arith.subf %72, %75 : vector<48x128xf32>
    %77 = math.exp %76 : vector<48x128xf32>
    %cst_46 = arith.constant dense<0.000000e+00> : vector<48x128xf32>
    %78 = tpu.matmul %7, %61, %cst_46 {dimension_numbers = #tpu.dot_dimension_numbers<[1], [0], [0], [1], [0, 0, 1, 1], [], []>} : vector<48x16xf32>, vector<16x128xf32>, vector<48x128xf32> -> vector<48x128xf32>
    %79 = arith.mulf %77, %78 : vector<48x128xf32>
    %cst_47 = arith.constant dense<0.000000e+00> : vector<16x128xf32>
    %80 = tpu.matmul %13, %79, %cst_47 {dimension_numbers = #tpu.dot_dimension_numbers<[1], [0], [0], [1], [0, 0, 1, 1], [], []>} : vector<16x48xf32>, vector<48x128xf32>, vector<16x128xf32> -> vector<16x128xf32>
    %cst_48 = arith.constant dense<0.000000e+00> : vector<16x128xf32>
    %81 = tpu.matmul %13, %77, %cst_48 {dimension_numbers = #tpu.dot_dimension_numbers<[1], [0], [0], [1], [0, 0, 1, 1], [], []>} : vector<16x48xf32>, vector<48x128xf32>, vector<16x128xf32> -> vector<16x128xf32>
    %cst_49 = arith.constant 1.000000e-30 : f32
    %82 = vector.broadcast %cst_49 : f32 to vector<16x128xf32>
    %83 = arith.maximumf %81, %82 : vector<16x128xf32>
    %84 = tpu.reciprocal %83 {approx = true} : vector<16x128xf32> -> vector<16x128xf32>
    %85 = arith.mulf %80, %84 : vector<16x128xf32>
    %86 = tpu.iota {dimensions = array<i32: 1>} : vector<16x128xi32>
    %c8_i32 = arith.constant 8 : i32
    %87 = vector.broadcast %c8_i32 : i32 to vector<16x128xi32>
    %88 = arith.cmpi slt, %86, %87 : vector<16x128xi32>
    %cst_50 = arith.constant -1.000000e+30 : f32
    %89 = vector.broadcast %cst_50 : f32 to vector<16x128xf32>
    %90 = arith.select %88, %85, %89 : vector<16x128xi1>, vector<16x128xf32>
    %cst_51 = arith.constant dense<0xFF800000> : vector<16xf32>
    %91 = vector.multi_reduction <maximumf>, %90, %cst_51 [1] : vector<16x128xf32> to vector<16xf32>
    %92 = vector.shape_cast %91 : vector<16xf32> to vector<16x1xf32>
    %93 = vector.broadcast %92 : vector<16x1xf32> to vector<16x128xf32>
    %94 = arith.subf %90, %93 : vector<16x128xf32>
    %95 = math.exp %94 : vector<16x128xf32>
    %cst_52 = arith.constant 0.000000e+00 : f32
    %96 = vector.broadcast %cst_52 : f32 to vector<16x128xf32>
    %97 = arith.select %88, %95, %96 : vector<16x128xi1>, vector<16x128xf32>
    %cst_53 = arith.constant dense<0.000000e+00> : vector<16xf32>
    %98 = vector.multi_reduction <add>, %97, %cst_53 [1] : vector<16x128xf32> to vector<16xf32>
    %99 = vector.shape_cast %98 : vector<16xf32> to vector<16x1xf32>
    %100 = math.log %99 : vector<16x1xf32>
    %101 = vector.broadcast %100 : vector<16x1xf32> to vector<16x128xf32>
    %102 = arith.subf %94, %101 : vector<16x128xf32>
    %c0_54 = arith.constant 0 : index
    %c0_55 = arith.constant 0 : index
    %103 = vector.load %arg15[%c0_54, %c0_55] : memref<16x128xf32, #tpu.memory_space<vmem>>, vector<16x128xf32>
    tpu.vector_store %arg15[%c0_54, %c0_55], %102 {strides = array<i32>} : memref<16x128xf32, #tpu.memory_space<vmem>>, vector<16x128xf32>,
    return
  }
  func.func @transform_0(%arg0: i32) -> (i32, i32) {
    %c0_i32 = arith.constant 0 : i32
    %c0_i32_0 = arith.constant 0 : i32
    %c0_i32_1 = arith.constant 0 : i32
    return %c0_i32, %c0_i32_0 : i32, i32
  }
  func.func @transform_1(%arg0: i32) -> (i32, i32) {
    %c0_i32 = arith.constant 0 : i32
    %c0_i32_0 = arith.constant 0 : i32
    %c0_i32_1 = arith.constant 0 : i32
    return %c0_i32, %c0_i32_0 : i32, i32
  }
  func.func @transform_2(%arg0: i32) -> (i32, i32) {
    %c0_i32 = arith.constant 0 : i32
    %c0_i32_0 = arith.constant 0 : i32
    %c0_i32_1 = arith.constant 0 : i32
    return %c0_i32, %c0_i32_0 : i32, i32
  }
  func.func @transform_3(%arg0: i32) -> (i32, i32) {
    %c0_i32 = arith.constant 0 : i32
    %c0_i32_0 = arith.constant 0 : i32
    %c0_i32_1 = arith.constant 0 : i32
    return %c0_i32, %c0_i32_0 : i32, i32
  }
  func.func @transform_4(%arg0: i32) -> (i32, i32) {
    %c0_i32 = arith.constant 0 : i32
    %c0_i32_0 = arith.constant 0 : i32
    %c0_i32_1 = arith.constant 0 : i32
    return %c0_i32, %c0_i32_0 : i32, i32
  }
  func.func @transform_5(%arg0: i32) -> (i32, i32) {
    %c0_i32 = arith.constant 0 : i32
    %c0_i32_0 = arith.constant 0 : i32
    %c0_i32_1 = arith.constant 0 : i32
    return %c0_i32, %c0_i32_0 : i32, i32
  }
  func.func @transform_6(%arg0: i32) -> (i32, i32) {
    %c0_i32 = arith.constant 0 : i32
    %c0_i32_0 = arith.constant 0 : i32
    %c0_i32_1 = arith.constant 0 : i32
    return %c0_i32, %c0_i32_0 : i32, i32
  }
  func.func @transform_7(%arg0: i32) -> (i32, i32) {
    %c0_i32 = arith.constant 0 : i32
    %c0_i32_0 = arith.constant 0 : i32
    %c0_i32_1 = arith.constant 0 : i32
    return %c0_i32, %c0_i32_0 : i32, i32
  }
  func.func @transform_8(%arg0: i32) -> (i32, i32) {
    %c0_i32 = arith.constant 0 : i32
    %c0_i32_0 = arith.constant 0 : i32
    %c0_i32_1 = arith.constant 0 : i32
    return %c0_i32, %c0_i32_0 : i32, i32
  }
  func.func @transform_9(%arg0: i32) -> (i32, i32) {
    %c0_i32 = arith.constant 0 : i32
    %c0_i32_0 = arith.constant 0 : i32
    %c0_i32_1 = arith.constant 0 : i32
    return %c0_i32, %c0_i32_0 : i32, i32
  }
  func.func @transform_10(%arg0: i32) -> (i32, i32) {
    %c0_i32 = arith.constant 0 : i32
    %c0_i32_0 = arith.constant 0 : i32
    %c0_i32_1 = arith.constant 0 : i32
    return %c0_i32, %c0_i32_0 : i32, i32
  }
  func.func @transform_11(%arg0: i32) -> (i32, i32) {
    %c0_i32 = arith.constant 0 : i32
    %c0_i32_0 = arith.constant 0 : i32
    %c0_i32_1 = arith.constant 0 : i32
    return %c0_i32, %c0_i32_0 : i32, i32
  }
  func.func @transform_12(%arg0: i32) -> (i32, i32) {
    %c0_i32 = arith.constant 0 : i32
    %c0_i32_0 = arith.constant 0 : i32
    %c0_i32_1 = arith.constant 0 : i32
    return %c0_i32, %c0_i32_0 : i32, i32
  }
  func.func @transform_13(%arg0: i32) -> (i32, i32) {
    %c0_i32 = arith.constant 0 : i32
    %c0_i32_0 = arith.constant 0 : i32
    %c0_i32_1 = arith.constant 0 : i32
    return %c0_i32, %c0_i32_0 : i32, i32
  }
  func.func @transform_14(%arg0: i32) -> (i32, i32) {
    %c0_i32 = arith.constant 0 : i32
    %c0_i32_0 = arith.constant 0 : i32
    %c0_i32_1 = arith.constant 0 : i32
    return %c0_i32, %c0_i32_0 : i32, i32
  }
}

</mosaic_0001>

<llo_original>
// kernel: tpu_custom_call.1
$region0: #{tpu_custom_call.1}
  #allocation0 [shape = 'u32[]', space=smem, size = 0x4, offset = 0x4, fixed_abs, tag = 'smem constant byte address 0x4 - core index']
  #allocation1 [shape = 'u32[72,128]{1,0:T(1,128)}', space=vmem, size = 0x9000, scoped, tag = 'internal scratch']
  %s0 = inlined_call_operand.vmem [shape: f32[16,16], index: 0, kind: input, shape index: {}]
  %s1 = inlined_call_operand.vmem [shape: s32[48,1], index: 1, kind: input, shape index: {}]
  %s2 = inlined_call_operand.vmem [shape: s32[1,48], index: 2, kind: input, shape index: {}]
  %s3 = inlined_call_operand.vmem [shape: f32[48,1], index: 3, kind: input, shape index: {}]
  %s4 = inlined_call_operand.vmem [shape: f32[16,64], index: 4, kind: input, shape index: {}]
  %s5 = inlined_call_operand.vmem [shape: f32[1,64], index: 5, kind: input, shape index: {}]
  %s6 = inlined_call_operand.vmem [shape: f32[1,64], index: 6, kind: input, shape index: {}]
  %s7 = inlined_call_operand.vmem [shape: f32[64,64], index: 7, kind: input, shape index: {}]
  %s8 = inlined_call_operand.vmem [shape: f32[1,64], index: 8, kind: input, shape index: {}]
  %s9 = inlined_call_operand.hbm [shape: f32[64,128], index: 9, kind: input, shape index: {}]
  %s10 = inlined_call_operand.vmem [shape: f32[1,128], index: 10, kind: input, shape index: {}]
  %s11 = inlined_call_operand.vmem [shape: f32[1,128], index: 11, kind: input, shape index: {}]
  %s12 = inlined_call_operand.hbm [shape: f32[128,128], index: 12, kind: input, shape index: {}]
  %s13 = inlined_call_operand.vmem [shape: f32[1,128], index: 13, kind: input, shape index: {}]
  %s14 = inlined_call_operand.hbm [shape: f32[16,128], index: 14, kind: output, shape index: {}]
  %s15 = sld [smem:[#allocation0]]
  $region74: #{tpu_custom_call.1} parent=0
    _
  %s17 = ssub.s32 1, %s15
  %s18 = scalar_select 0, %s17, %s15
  $region1: #{tpu_custom_call.1} parent=0
    #allocation2 [shape = 'u8[32768]{0}', space=vmem, size = 0x8000, scoped, tag = 'input window, operand 9, single buffered']
    #allocation3 [shape = 's32[1]{0}', space=sflag, size = 0x4, scoped, tag = 'scoped memory for tpu_custom_call.1']
    #allocation4 [shape = 's32[1]{0}', space=sflag, size = 0x4, scoped, tag = 'scoped memory for tpu_custom_call.1']
    #allocation5 [shape = 'u8[65536]{0}', space=vmem, size = 0x10000, scoped, tag = 'input window, operand 12, single buffered']
    #allocation6 [shape = 's32[1]{0}', space=sflag, size = 0x4, scoped, tag = 'scoped memory for tpu_custom_call.1']
    #allocation7 [shape = 'u8[8192]{0}', space=vmem, size = 0x2000, scoped, tag = 'output window, operand 0, single buffered']
    %19 = vsyncpa [#allocation3], 0
    %20 = vsyncpa [#allocation6], 0
    %21 = vsyncpa [#allocation4], 0
    // Predicated region
    $region2: #{tpu_custom_call.1} parent=1 // pred_check
      _
    $region3: #{tpu_custom_call.1} parent=1 // pred_check_branch
      %23 = sbr.rel (0) target = $region5
    $region4: #{tpu_custom_call.1} parent=1 // pred_region
      _
    $region5: #{tpu_custom_call.1} parent=1 // pred_fallthru
      _
    // Predicated region
    $region6: #{tpu_custom_call.1} parent=1 // pred_check
      _
    $region7: #{tpu_custom_call.1} parent=1 // pred_check_branch
      %25 = sbr.rel (0) target = $region9
    $region8: #{tpu_custom_call.1} parent=1 // pred_region
      _
    $region9: #{tpu_custom_call.1} parent=1 // pred_fallthru
      _
    // Predicated region
    $region10: #{tpu_custom_call.1} parent=1 // pred_check
      _
    $region11: #{tpu_custom_call.1} parent=1 // pred_check_branch
      %27 = sbr.rel (0) target = $region13
    $region12: #{tpu_custom_call.1} parent=1 // pred_region
      _
    $region13: #{tpu_custom_call.1} parent=1 // pred_fallthru
      _
    // Predicated region
    $region14: #{tpu_custom_call.1} parent=1 // pred_check
      _
    $region15: #{tpu_custom_call.1} parent=1 // pred_check_branch
      %29 = sbr.rel (0) target = $region17
    $region16: #{tpu_custom_call.1} parent=1 // pred_region
      _
    $region17: #{tpu_custom_call.1} parent=1 // pred_fallthru
      _
    // Predicated region
    $region18: #{tpu_custom_call.1} parent=1 // pred_check
      _
    $region19: #{tpu_custom_call.1} parent=1 // pred_check_branch
      %31 = sbr.rel (0) target = $region21
    $region20: #{tpu_custom_call.1} parent=1 // pred_region
      _
    $region21: #{tpu_custom_call.1} parent=1 // pred_fallthru
      _
    // Predicated region
    $region22: #{tpu_custom_call.1} parent=1 // pred_check
      _
    $region23: #{tpu_custom_call.1} parent=1 // pred_check_branch
      %33 = sbr.rel (0) target = $region25
    $region24: #{tpu_custom_call.1} parent=1 // pred_region
      _
    $region25: #{tpu_custom_call.1} parent=1 // pred_fallthru
      _
    // Predicated region
    $region26: #{tpu_custom_call.1} parent=1 // pred_check
      _
    $region27: #{tpu_custom_call.1} parent=1 // pred_check_branch
      %35 = sbr.rel (0) target = $region29
    $region28: #{tpu_custom_call.1} parent=1 // pred_region
      _
    $region29: #{tpu_custom_call.1} parent=1 // pred_fallthru
      _
    // Predicated region
    $region30: #{tpu_custom_call.1} parent=1 // pred_check
      _
    $region31: #{tpu_custom_call.1} parent=1 // pred_check_branch
      %37 = sbr.rel (0) target = $region33
    $region32: #{tpu_custom_call.1} parent=1 // pred_region
      _
    $region33: #{tpu_custom_call.1} parent=1 // pred_fallthru
      _
    // Predicated region
    $region34: #{tpu_custom_call.1} parent=1 // pred_check
      _
    $region35: #{tpu_custom_call.1} parent=1 // pred_check_branch
      %39 = sbr.rel (0) target = $region37
    $region36: #{tpu_custom_call.1} parent=1 // pred_region
      _
    $region37: #{tpu_custom_call.1} parent=1 // pred_fallthru
      _
    // Predicated region
    $region38: #{tpu_custom_call.1} parent=1 // pred_check
      _
    $region39: #{tpu_custom_call.1} parent=1 // pred_check_branch
      %41 = sbr.rel (0) target = $region41
    $region40: #{tpu_custom_call.1} parent=1 // pred_region
      %43 = vsyncadd [#allocation3], 0
      %s44 = sshll.u32 %s9, 4
      %s45 = int_to_ptr.hbm [resolvable:$true] %s44
      %s46 = sshll.u32 [#allocation2], 4
      %s47 = int_to_ptr.vmem [resolvable:$true] %s46
      %52 = dma.hbm_to_vmem [thread:$0]  %s45, 1024, %s47, [#allocation3], 128, 128, 8
    $region41: #{tpu_custom_call.1} parent=1 // pred_fallthru
      _
    // Predicated region
    $region42: #{tpu_custom_call.1} parent=1 // pred_check
      _
    $region43: #{tpu_custom_call.1} parent=1 // pred_check_branch
      %54 = sbr.rel (0) target = $region45
    $region44: #{tpu_custom_call.1} parent=1 // pred_region
      _
    $region45: #{tpu_custom_call.1} parent=1 // pred_fallthru
      _
    // Predicated region
    $region46: #{tpu_custom_call.1} parent=1 // pred_check
      _
    $region47: #{tpu_custom_call.1} parent=1 // pred_check_branch
      %56 = sbr.rel (0) target = $region49
    $region48: #{tpu_custom_call.1} parent=1 // pred_region
      _
    $region49: #{tpu_custom_call.1} parent=1 // pred_fallthru
      _
    // Predicated region
    $region50: #{tpu_custom_call.1} parent=1 // pred_check
      _
    $region51: #{tpu_custom_call.1} parent=1 // pred_check_branch
      %58 = sbr.rel (0) target = $region53
    $region52: #{tpu_custom_call.1} parent=1 // pred_region
      %60 = vsyncadd [#allocation6], 0
      %s61 = sshll.u32 %s12, 4
      %s62 = int_to_ptr.hbm [resolvable:$true] %s61
      %s63 = sshll.u32 [#allocation5], 4
      %s64 = int_to_ptr.vmem [resolvable:$true] %s63
      %69 = dma.hbm_to_vmem [thread:$0]  %s62, 2048, %s64, [#allocation6], 128, 128, 8
    $region53: #{tpu_custom_call.1} parent=1 // pred_fallthru
      _
    // Predicated region
    $region54: #{tpu_custom_call.1} parent=1 // pred_check
      _
    $region55: #{tpu_custom_call.1} parent=1 // pred_check_branch
      %71 = sbr.rel (0) target = $region57
    $region56: #{tpu_custom_call.1} parent=1 // pred_region
      _
    $region57: #{tpu_custom_call.1} parent=1 // pred_fallthru
      _
    // Predicated region
    $region58: #{tpu_custom_call.1} parent=1 // pred_check
      _
    $region59: #{tpu_custom_call.1} parent=1 // pred_check_branch
      %73 = sbr.rel (0) target = $region61
    $region60: #{tpu_custom_call.1} parent=1 // pred_region
      %75 = dma.done [#allocation3], 1024
    $region61: #{tpu_custom_call.1} parent=1 // pred_fallthru
      _
    // Predicated region
    $region62: #{tpu_custom_call.1} parent=1 // pred_check
      _
    $region63: #{tpu_custom_call.1} parent=1 // pred_check_branch
      %77 = sbr.rel (0) target = $region65
    $region64: #{tpu_custom_call.1} parent=1 // pred_region
      %79 = dma.done [#allocation6], 2048
    $region65: #{tpu_custom_call.1} parent=1 // pred_fallthru
      _
    %v80 = vld [vmem:[%s1] sm:$0xff]
    %v81 = vld [vmem:[%s1 + $0x8] sm:$0xff]
    %v82 = vld [vmem:[%s1 + $0x10] sm:$0xff]
    %v83 = vld [vmem:[%s1 + $0x18] sm:$0xff]
    %v84 = vld [vmem:[%s1 + $0x20] sm:$0xff]
    %v85 = vld [vmem:[%s1 + $0x28] sm:$0xff]
    %v86 = vld [vmem:[%s2] sm:$0x1]
    %v87 = vlaneseq
    %v88 = vand.u32 %v87, 127
    %89 = vset.pattern.permute.xlu0 0
    %90 = vperm.xlu0 %89, %v80
    %v91 = vpop.permute.xlu0 %90
    %92 = vset.pattern.permute.xlu0 0
    %93 = vperm.xlu0 %92, %v81
    %v94 = vpop.permute.xlu0 %93
    %95 = vset.pattern.permute.xlu0 0
    %96 = vperm.xlu0 %95, %v82
    %v97 = vpop.permute.xlu0 %96
    %98 = vset.pattern.permute.xlu0 0
    %99 = vperm.xlu0 %98, %v83
    %v100 = vpop.permute.xlu0 %99
    %101 = vset.pattern.permute.xlu0 0
    %102 = vperm.xlu0 %101, %v84
    %v103 = vpop.permute.xlu0 %102
    %104 = vset.pattern.permute.xlu0 0
    %105 = vperm.xlu0 %104, %v85
    %v106 = vpop.permute.xlu0 %105
    %vm107 = vcmp.eq.s32.totalorder %v88, %v91
    %vm108 = vcmp.eq.s32.totalorder %v88, %v94
    %vm109 = vcmp.eq.s32.totalorder %v88, %v97
    %vm110 = vcmp.eq.s32.totalorder %v88, %v100
    %vm111 = vcmp.eq.s32.totalorder %v88, %v103
    %vm112 = vcmp.eq.s32.totalorder %v88, %v106
    %v113 = vsel %vm107, 1.0, 0.0
    %v114 = vsel %vm108, 1.0, 0.0
    %v115 = vsel %vm109, 1.0, 0.0
    %v116 = vsel %vm110, 1.0, 0.0
    %v117 = vsel %vm111, 1.0, 0.0
    %v118 = vsel %vm112, 1.0, 0.0
    %v119 = vlaneseq
    %v120 = vshrl.u32 %v119, 7
    %v121 = vadd.s32 %v120, 8
    %v122 = vperm.slane %v86, 0
    %vm123 = vcmp.eq.s32.totalorder %v120, %v122
    %vm124 = vcmp.eq.s32.totalorder %v121, %v122
    %v125 = vsel %vm123, 1.0, 0.0
    %v126 = vsel %vm124, 1.0, 0.0
    %v127 = vld [vmem:[%s3] sm:$0xff]
    %v128 = vld [vmem:[%s3 + $0x8] sm:$0xff]
    %v129 = vld [vmem:[%s3 + $0x10] sm:$0xff]
    %v130 = vld [vmem:[%s3 + $0x18] sm:$0xff]
    %v131 = vld [vmem:[%s3 + $0x20] sm:$0xff]
    %v132 = vld [vmem:[%s3 + $0x28] sm:$0xff]
    %v133 = vld [vmem:[%s0] sm:$0xff]
    %v134 = vld [vmem:[%s0 + $0x8] sm:$0xff]
    %v135 = vld [vmem:[%s4] sm:$0xff]
    %v136 = vld [vmem:[%s4 + $0x8] sm:$0xff]
    %v137 = vld [vmem:[%s5] sm:$0x1]
    %v138 = vld [vmem:[%s6] sm:$0x1]
    %v139 = vld [vmem:[%s7] sm:$0xff]
    %v140 = vld [vmem:[%s7 + $0x8] sm:$0xff]
    %v141 = vld [vmem:[%s7 + $0x10] sm:$0xff]
    %v142 = vld [vmem:[%s7 + $0x18] sm:$0xff]
    %v143 = vld [vmem:[%s7 + $0x20] sm:$0xff]
    %v144 = vld [vmem:[%s7 + $0x28] sm:$0xff]
    %v145 = vld [vmem:[%s7 + $0x30] sm:$0xff]
    %v146 = vld [vmem:[%s7 + $0x38] sm:$0xff]
    %v147 = vld [vmem:[%s8] sm:$0x1]
    %v149 = vperm.slane %v137, 0
    %vm151 = vcmask 130048
    %v153 = vsel %vm151, %v133, 0
    %v156 = vsel %vm151, %v134, 0
    %158 = vmatpush.msra.mxu0 0.0
    %159 = vmatpush.msra.mxu0 0.0
    %160 = vmatpush.msra.mxu0 0.0
    %161 = vmatpush.msra.mxu0 0.0
    %162 = vmatpush.msra.mxu0 0.0
    %163 = vmatpush.msra.mxu0 0.0
    %164 = vmatpush.msra.mxu0 0.0
    %165 = vmatpush.msra.mxu0 0.0
    %166 = vmatpush.msra.mxu0 0.0
    %167 = vmatpush.msra.mxu0 0.0
    %168 = vmatpush.msra.mxu0 0.0
    %169 = vmatpush.msra.mxu0 0.0
    %170 = vmatpush.msra.mxu0 0.0
    %171 = vmatpush.msra.mxu0 0.0
    %172 = vmatpush.msra.mxu0 %v136
    %173 = vmatpush.msra.mxu0 %v135
    %174 = vmatmul.f32.gmra.mxu0 %v153
    %v175 = vpop.f32.mrf.mxu0
    %v176 = vadd.f32 %v149, %v175
    %177 = vmatmul.f32.gmra.mxu0 %v156
    %v178 = vpop.f32.mrf.mxu0
    %v179 = vadd.f32 %v149, %v178
    %180 = vdwg.mxu0
    %182 = vset.pattern.permute.xlu0 0
    %183 = vperm.xlu0 %182, %v127
    %v184 = vpop.permute.xlu0 %183
    %187 = vset.pattern.permute.xlu0 0
    %188 = vperm.xlu0 %187, %v128
    %v189 = vpop.permute.xlu0 %188
    %192 = vset.pattern.permute.xlu0 0
    %193 = vperm.xlu0 %192, %v129
    %v194 = vpop.permute.xlu0 %193
    %197 = vset.pattern.permute.xlu0 0
    %198 = vperm.xlu0 %197, %v130
    %v199 = vpop.permute.xlu0 %198
    %202 = vset.pattern.permute.xlu0 0
    %203 = vperm.xlu0 %202, %v131
    %v204 = vpop.permute.xlu0 %203
    %207 = vset.pattern.permute.xlu0 0
    %208 = vperm.xlu0 %207, %v132
    %v209 = vpop.permute.xlu0 %208
    %v212 = vperm.slane %v138, 0
    %v214 = vmul.f32 %v184, %v212
    %v215 = vmul.f32 %v189, %v212
    %v216 = vmul.f32 %v194, %v212
    %v217 = vmul.f32 %v199, %v212
    %v218 = vmul.f32 %v204, %v212
    %v219 = vmul.f32 %v209, %v212
    %vm220 = vcmp.gt.f32.partialorder %v214, 0.0
    %vm221 = vcmp.gt.f32.partialorder %v215, 0.0
    %vm222 = vcmp.gt.f32.partialorder %v216, 0.0
    %vm223 = vcmp.gt.f32.partialorder %v217, 0.0
    %vm224 = vcmp.gt.f32.partialorder %v218, 0.0
    %vm225 = vcmp.gt.f32.partialorder %v219, 0.0
    %v226 = vmul.f32 %v214, 0.2
    %v227 = vmul.f32 %v215, 0.2
    %v228 = vmul.f32 %v216, 0.2
    %v229 = vmul.f32 %v217, 0.2
    %v230 = vmul.f32 %v218, 0.2
    %v231 = vmul.f32 %v219, 0.2
    %v232 = vsel %vm220, %v214, %v226
    %v233 = vsel %vm221, %v215, %v227
    %v234 = vsel %vm222, %v216, %v228
    %v235 = vsel %vm223, %v217, %v229
    %v236 = vsel %vm224, %v218, %v230
    %v237 = vsel %vm225, %v219, %v231
    %v239 = vperm.slane %v147, 0
    %vm241 = vcmask 523264
    %v243 = vsel %vm241, %v232, 0
    %v246 = vsel %vm241, %v233, 0
    %v249 = vsel %vm241, %v234, 0
    %v252 = vsel %vm241, %v235, 0
    %v255 = vsel %vm241, %v236, 0
    %v258 = vsel %vm241, %v237, 0
    %260 = vmatpush.msra.mxu0 0.0
    %261 = vmatpush.msra.mxu0 0.0
    %262 = vmatpush.msra.mxu0 0.0
    %263 = vmatpush.msra.mxu0 0.0
    %264 = vmatpush.msra.mxu0 0.0
    %265 = vmatpush.msra.mxu0 0.0
    %266 = vmatpush.msra.mxu0 0.0
    %267 = vmatpush.msra.mxu0 0.0
    %268 = vmatpush.msra.mxu0 %v146
    %269 = vmatpush.msra.mxu0 %v145
    %270 = vmatpush.msra.mxu0 %v144
    %271 = vmatpush.msra.mxu0 %v143
    %272 = vmatpush.msra.mxu0 %v142
    %273 = vmatpush.msra.mxu0 %v141
    %274 = vmatpush.msra.mxu0 %v140
    %275 = vmatpush.msra.mxu0 %v139
    %276 = vmatmul.f32.gmra.mxu0 %v243
    %v277 = vpop.f32.mrf.mxu0
    %v278 = vadd.f32 %v239, %v277
    %279 = vmatmul.f32.gmra.mxu0 %v246
    %v280 = vpop.f32.mrf.mxu0
    %v281 = vadd.f32 %v239, %v280
    %282 = vmatmul.f32.gmra.mxu0 %v249
    %v283 = vpop.f32.mrf.mxu0
    %v284 = vadd.f32 %v239, %v283
    %285 = vmatmul.f32.gmra.mxu0 %v252
    %v286 = vpop.f32.mrf.mxu0
    %v287 = vadd.f32 %v239, %v286
    %288 = vmatmul.f32.gmra.mxu0 %v255
    %v289 = vpop.f32.mrf.mxu0
    %v290 = vadd.f32 %v239, %v289
    %291 = vmatmul.f32.gmra.mxu0 %v258
    %v292 = vpop.f32.mrf.mxu0
    %v293 = vadd.f32 %v239, %v292
    %294 = vdwg.mxu0
    %v295 = vsel %vm241, %v278, -inf
    %v296 = vsel %vm241, %v281, -inf
    %v297 = vsel %vm241, %v284, -inf
    %v298 = vsel %vm241, %v287, -inf
    %v299 = vsel %vm241, %v290, -inf
    %v300 = vmax.f32 %v295, %v299
    %v301 = vsel %vm241, %v293, -inf
    %v302 = vmax.f32 %v296, %v301
    %v303 = vmax.f32 %v300, %v302
    %v304 = vmax.f32 %v297, %v298
    %v305 = vmax.f32 %v303, %v304
    %v306 = vrot.slane %v305, 4
    %v307 = vmax.f32 %v305, %v306
    %v308 = vrot.slane %v307, 2
    %v309 = vmax.f32 %v307, %v308
    %v310 = vrot.slane %v309, 1
    %v311 = vmax.f32 %v309, %v310
    %v312 = vsub.f32 %v278, %v311
    %v313 = vsub.f32 %v281, %v311
    %v314 = vsub.f32 %v284, %v311
    %v315 = vsub.f32 %v287, %v311
    %v316 = vsub.f32 %v290, %v311
    %v317 = vsub.f32 %v293, %v311
    %v318 = vmul.f32 %v312, 1.442695
    %v319 = vpow.pop %v318
    %v320 = vmul.f32 %v313, 1.442695
    %v321 = vpow.pop %v320
    %v322 = vmul.f32 %v314, 1.442695
    %v323 = vpow.pop %v322
    %v324 = vmul.f32 %v315, 1.442695
    %v325 = vpow.pop %v324
    %v326 = vmul.f32 %v316, 1.442695
    %v327 = vpow.pop %v326
    %v328 = vmul.f32 %v317, 1.442695
    %v329 = vpow.pop %v328
    %v331 = vsel %vm151, %v113, 0
    %v334 = vsel %vm151, %v114, 0
    %v337 = vsel %vm151, %v115, 0
    %v340 = vsel %vm151, %v116, 0
    %v343 = vsel %vm151, %v117, 0
    %v346 = vsel %vm151, %v118, 0
    %348 = vmatpush.msra.mxu0 0.0
    %349 = vmatpush.msra.mxu0 0.0
    %350 = vmatpush.msra.mxu0 0.0
    %351 = vmatpush.msra.mxu0 0.0
    %352 = vmatpush.msra.mxu0 0.0
    %353 = vmatpush.msra.mxu0 0.0
    %354 = vmatpush.msra.mxu0 0.0
    %355 = vmatpush.msra.mxu0 0.0
    %356 = vmatpush.msra.mxu0 0.0
    %357 = vmatpush.msra.mxu0 0.0
    %358 = vmatpush.msra.mxu0 0.0
    %359 = vmatpush.msra.mxu0 0.0
    %360 = vmatpush.msra.mxu0 0.0
    %361 = vmatpush.msra.mxu0 0.0
    %362 = vmatpush.msra.mxu0 %v179
    %363 = vmatpush.msra.mxu0 %v176
    %364 = vmatmul.f32.gmra.mxu0 %v331
    %v365 = vpop.f32.mrf.mxu0
    %v366 = vadd.f32 0.0, %v365
    %367 = vmatmul.f32.gmra.mxu0 %v334
    %v368 = vpop.f32.mrf.mxu0
    %v369 = vadd.f32 0.0, %v368
    %370 = vmatmul.f32.gmra.mxu0 %v337
    %v371 = vpop.f32.mrf.mxu0
    %v372 = vadd.f32 0.0, %v371
    %373 = vmatmul.f32.gmra.mxu0 %v340
    %v374 = vpop.f32.mrf.mxu0
    %v375 = vadd.f32 0.0, %v374
    %376 = vmatmul.f32.gmra.mxu0 %v343
    %v377 = vpop.f32.mrf.mxu0
    %v378 = vadd.f32 0.0, %v377
    %379 = vmatmul.f32.gmra.mxu0 %v346
    %v380 = vpop.f32.mrf.mxu0
    %v381 = vadd.f32 0.0, %v380
    %382 = vdwg.mxu0
    %v383 = vmul.f32 %v319, %v366
    %v384 = vmul.f32 %v321, %v369
    %v385 = vmul.f32 %v323, %v372
    %v386 = vmul.f32 %v325, %v375
    %v387 = vmul.f32 %v327, %v378
    %v388 = vmul.f32 %v329, %v381
    %vm389 = vcmask 392192
    %v391 = vsel %vm389, %v125, 0
    %v394 = vsel %vm389, %v126, 0
    %396 = vmatpush.msra.mxu0 0.0
    %397 = vmatpush.msra.mxu0 0.0
    %398 = vmatpush.msra.mxu0 0.0
    %399 = vmatpush.msra.mxu0 0.0
    %400 = vmatpush.msra.mxu0 0.0
    %401 = vmatpush.msra.mxu0 0.0
    %402 = vmatpush.msra.mxu0 0.0
    %403 = vmatpush.msra.mxu0 0.0
    %404 = vmatpush.msra.mxu0 0.0
    %405 = vmatpush.msra.mxu0 0.0
    %406 = vmatpush.msra.mxu0 %v388
    %407 = vmatpush.msra.mxu0 %v387
    %408 = vmatpush.msra.mxu0 %v386
    %409 = vmatpush.msra.mxu0 %v385
    %410 = vmatpush.msra.mxu0 %v384
    %411 = vmatpush.msra.mxu0 %v383
    %412 = vmatmul.f32.gmra.mxu0 %v391
    %v413 = vpop.f32.mrf.mxu0
    %v414 = vadd.f32 0.0, %v413
    %415 = vmatmul.f32.gmra.mxu0 %v394
    %v416 = vpop.f32.mrf.mxu0
    %v417 = vadd.f32 0.0, %v416
    %418 = vdwg.mxu0
    %419 = vmatpush.msra.mxu0 0.0
    %420 = vmatpush.msra.mxu0 0.0
    %421 = vmatpush.msra.mxu0 0.0
    %422 = vmatpush.msra.mxu0 0.0
    %423 = vmatpush.msra.mxu0 0.0
    %424 = vmatpush.msra.mxu0 0.0
    %425 = vmatpush.msra.mxu0 0.0
    %426 = vmatpush.msra.mxu0 0.0
    %427 = vmatpush.msra.mxu0 0.0
    %428 = vmatpush.msra.mxu0 0.0
    %429 = vmatpush.msra.mxu0 %v329
    %430 = vmatpush.msra.mxu0 %v327
    %431 = vmatpush.msra.mxu0 %v325
    %432 = vmatpush.msra.mxu0 %v323
    %433 = vmatpush.msra.mxu0 %v321
    %434 = vmatpush.msra.mxu0 %v319
    %435 = vmatmul.f32.gmra.mxu0 %v391
    %v436 = vpop.f32.mrf.mxu0
    %v437 = vadd.f32 0.0, %v436
    %438 = vmatmul.f32.gmra.mxu0 %v394
    %v439 = vpop.f32.mrf.mxu0
    %v440 = vadd.f32 0.0, %v439
    %441 = vdwg.mxu0
    %v442 = vmax.f32 %v437, 1e-30
    %v443 = vmax.f32 %v440, 1e-30
    %v444 = vrcp.pop %v442
    %v445 = vrcp.pop %v443
    %v446 = vmul.f32 %v414, %v444
    %v447 = vmul.f32 %v417, %v445
    %vm448 = vcmp.gt.f32.partialorder %v446, 0.0
    %vm449 = vcmp.gt.f32.partialorder %v447, 0.0
    %v450 = vmul.f32 %v446, 1.442695
    %v451 = vpow.pop %v450
    %v452 = vmul.f32 %v447, 1.442695
    %v453 = vpow.pop %v452
    %v454 = vsub.f32 %v451, 1.0
    %v455 = vsub.f32 %v453, 1.0
    %v456 = vsel %vm448, %v446, %v454
    %v457 = vsel %vm449, %v447, %v455
    %v458 = vld [vmem:[#allocation2] sm:$0xff]
    %v459 = vld [vmem:[#allocation2 + $0x8] sm:$0xff]
    %v460 = vld [vmem:[#allocation2 + $0x10] sm:$0xff]
    %v461 = vld [vmem:[#allocation2 + $0x18] sm:$0xff]
    %v462 = vld [vmem:[#allocation2 + $0x20] sm:$0xff]
    %v463 = vld [vmem:[#allocation2 + $0x28] sm:$0xff]
    %v464 = vld [vmem:[#allocation2 + $0x30] sm:$0xff]
    %v465 = vld [vmem:[#allocation2 + $0x38] sm:$0xff]
    %v466 = vld [vmem:[%s10] sm:$0x1]
    %v467 = vld [vmem:[%s11] sm:$0x1]
    %v468 = vld [vmem:[#allocation5] sm:$0xff]
    %v469 = vld [vmem:[#allocation5 + $0x8] sm:$0xff]
    %v470 = vld [vmem:[#allocation5 + $0x10] sm:$0xff]
    %v471 = vld [vmem:[#allocation5 + $0x18] sm:$0xff]
    %v472 = vld [vmem:[#allocation5 + $0x20] sm:$0xff]
    %v473 = vld [vmem:[#allocation5 + $0x28] sm:$0xff]
    %v474 = vld [vmem:[#allocation5 + $0x30] sm:$0xff]
    %v475 = vld [vmem:[#allocation5 + $0x38] sm:$0xff]
    %v476 = vld [vmem:[#allocation5 + $0x40] sm:$0xff]
    %v477 = vld [vmem:[#allocation5 + $0x48] sm:$0xff]
    %v478 = vld [vmem:[#allocation5 + $0x50] sm:$0xff]
    %v479 = vld [vmem:[#allocation5 + $0x58] sm:$0xff]
    %v480 = vld [vmem:[#allocation5 + $0x60] sm:$0xff]
    %v481 = vld [vmem:[#allocation5 + $0x68] sm:$0xff]
    %v482 = vld [vmem:[#allocation5 + $0x70] sm:$0xff]
    %v483 = vld [vmem:[#allocation5 + $0x78] sm:$0xff]
    %v484 = vld [vmem:[%s13] sm:$0x1]
    %v486 = vperm.slane %v466, 0
    %v489 = vsel %vm241, %v456, 0
    %v492 = vsel %vm241, %v457, 0
    %494 = vmatpush.msra.mxu0 0.0
    %495 = vmatpush.msra.mxu0 0.0
    %496 = vmatpush.msra.mxu0 0.0
    %497 = vmatpush.msra.mxu0 0.0
    %498 = vmatpush.msra.mxu0 0.0
    %499 = vmatpush.msra.mxu0 0.0
    %500 = vmatpush.msra.mxu0 0.0
    %501 = vmatpush.msra.mxu0 0.0
    %502 = vmatpush.msra.mxu0 %v465
    %503 = vmatpush.msra.mxu0 %v464
    %504 = vmatpush.msra.mxu0 %v463
    %505 = vmatpush.msra.mxu0 %v462
    %506 = vmatpush.msra.mxu0 %v461
    %507 = vmatpush.msra.mxu0 %v460
    %508 = vmatpush.msra.mxu0 %v459
    %509 = vmatpush.msra.mxu0 %v458
    %510 = vmatmul.f32.gmra.mxu0 %v489
    %v511 = vpop.f32.mrf.mxu0
    %v512 = vadd.f32 %v486, %v511
    %513 = vmatmul.f32.gmra.mxu0 %v492
    %v514 = vpop.f32.mrf.mxu0
    %v515 = vadd.f32 %v486, %v514
    %516 = vdwg.mxu0
    %v518 = vperm.slane %v467, 0
    %v520 = vmul.f32 %v184, %v518
    %v521 = vmul.f32 %v189, %v518
    %v522 = vmul.f32 %v194, %v518
    %v523 = vmul.f32 %v199, %v518
    %v524 = vmul.f32 %v204, %v518
    %v525 = vmul.f32 %v209, %v518
    %vm526 = vcmp.gt.f32.partialorder %v520, 0.0
    %vm527 = vcmp.gt.f32.partialorder %v521, 0.0
    %vm528 = vcmp.gt.f32.partialorder %v522, 0.0
    %vm529 = vcmp.gt.f32.partialorder %v523, 0.0
    %vm530 = vcmp.gt.f32.partialorder %v524, 0.0
    %vm531 = vcmp.gt.f32.partialorder %v525, 0.0
    %v532 = vmul.f32 %v520, 0.2
    %v533 = vmul.f32 %v521, 0.2
    %v534 = vmul.f32 %v522, 0.2
    %v535 = vmul.f32 %v523, 0.2
    %v536 = vmul.f32 %v524, 0.2
    %v537 = vmul.f32 %v525, 0.2
    %v538 = vsel %vm526, %v520, %v532
    %v539 = vsel %vm527, %v521, %v533
    %v540 = vsel %vm528, %v522, %v534
    %v541 = vsel %vm529, %v523, %v535
    %v542 = vsel %vm530, %v524, %v536
    %v543 = vsel %vm531, %v525, %v537
    %v545 = vperm.slane %v484, 0
    %547 = vmatpush.msra.mxu0 %v483
    %548 = vmatpush.msra.mxu0 %v482
    %549 = vmatpush.msra.mxu0 %v481
    %550 = vmatpush.msra.mxu0 %v480
    %551 = vmatpush.msra.mxu0 %v479
    %552 = vmatpush.msra.mxu0 %v478
    %553 = vmatpush.msra.mxu0 %v477
    %554 = vmatpush.msra.mxu0 %v476
    %555 = vmatpush.msra.mxu0 %v475
    %556 = vmatpush.msra.mxu0 %v474
    %557 = vmatpush.msra.mxu0 %v473
    %558 = vmatpush.msra.mxu0 %v472
    %559 = vmatpush.msra.mxu0 %v471
    %560 = vmatpush.msra.mxu0 %v470
    %561 = vmatpush.msra.mxu0 %v469
    %562 = vmatpush.msra.mxu0 %v468
    %563 = vmatmul.f32.gmra.mxu0 %v538
    %v564 = vpop.f32.mrf.mxu0
    %v565 = vadd.f32 %v545, %v564
    %566 = vmatmul.f32.gmra.mxu0 %v539
    %v567 = vpop.f32.mrf.mxu0
    %v568 = vadd.f32 %v545, %v567
    %569 = vmatmul.f32.gmra.mxu0 %v540
    %v570 = vpop.f32.mrf.mxu0
    %v571 = vadd.f32 %v545, %v570
    %572 = vmatmul.f32.gmra.mxu0 %v541
    %v573 = vpop.f32.mrf.mxu0
    %v574 = vadd.f32 %v545, %v573
    %575 = vmatmul.f32.gmra.mxu0 %v542
    %v576 = vpop.f32.mrf.mxu0
    %v577 = vadd.f32 %v545, %v576
    %578 = vmatmul.f32.gmra.mxu0 %v543
    %v579 = vpop.f32.mrf.mxu0
    %v580 = vadd.f32 %v545, %v579
    %581 = vdwg.mxu0
    %v582 = vmax.f32 %v565, %v577
    %v583 = vmax.f32 %v568, %v580
    %v584 = vmax.f32 %v582, %v583
    %v585 = vmax.f32 %v571, %v574
    %v586 = vmax.f32 %v584, %v585
    %v587 = vrot.slane %v586, 4
    %v588 = vmax.f32 %v586, %v587
    %v589 = vrot.slane %v588, 2
    %v590 = vmax.f32 %v588, %v589
    %v591 = vrot.slane %v590, 1
    %v592 = vmax.f32 %v590, %v591
    %v593 = vsub.f32 %v565, %v592
    %v594 = vsub.f32 %v568, %v592
    %v595 = vsub.f32 %v571, %v592
    %v596 = vsub.f32 %v574, %v592
    %v597 = vsub.f32 %v577, %v592
    %v598 = vsub.f32 %v580, %v592
    %v599 = vmul.f32 %v593, 1.442695
    %v600 = vpow.pop %v599
    %v601 = vmul.f32 %v594, 1.442695
    %v602 = vpow.pop %v601
    %v603 = vmul.f32 %v595, 1.442695
    %v604 = vpow.pop %v603
    %v605 = vmul.f32 %v596, 1.442695
    %v606 = vpow.pop %v605
    %v607 = vmul.f32 %v597, 1.442695
    %v608 = vpow.pop %v607
    %v609 = vmul.f32 %v598, 1.442695
    %v610 = vpow.pop %v609
    %611 = vmatpush.msra.mxu0 0.0
    %612 = vmatpush.msra.mxu0 0.0
    %613 = vmatpush.msra.mxu0 0.0
    %614 = vmatpush.msra.mxu0 0.0
    %615 = vmatpush.msra.mxu0 0.0
    %616 = vmatpush.msra.mxu0 0.0
    %617 = vmatpush.msra.mxu0 0.0
    %618 = vmatpush.msra.mxu0 0.0
    %619 = vmatpush.msra.mxu0 0.0
    %620 = vmatpush.msra.mxu0 0.0
    %621 = vmatpush.msra.mxu0 0.0
    %622 = vmatpush.msra.mxu0 0.0
    %623 = vmatpush.msra.mxu0 0.0
    %624 = vmatpush.msra.mxu0 0.0
    %625 = vmatpush.msra.mxu0 %v515
    %626 = vmatpush.msra.mxu0 %v512
    %627 = vmatmul.f32.gmra.mxu0 %v331
    %v628 = vpop.f32.mrf.mxu0
    %v629 = vadd.f32 0.0, %v628
    %630 = vmatmul.f32.gmra.mxu0 %v334
    %v631 = vpop.f32.mrf.mxu0
    %v632 = vadd.f32 0.0, %v631
    %633 = vmatmul.f32.gmra.mxu0 %v337
    %v634 = vpop.f32.mrf.mxu0
    %v635 = vadd.f32 0.0, %v634
    %636 = vmatmul.f32.gmra.mxu0 %v340
    %v637 = vpop.f32.mrf.mxu0
    %v638 = vadd.f32 0.0, %v637
    %639 = vmatmul.f32.gmra.mxu0 %v343
    %v640 = vpop.f32.mrf.mxu0
    %v641 = vadd.f32 0.0, %v640
    %642 = vmatmul.f32.gmra.mxu0 %v346
    %v643 = vpop.f32.mrf.mxu0
    %v644 = vadd.f32 0.0, %v643
    %645 = vdwg.mxu0
    %v646 = vmul.f32 %v600, %v629
    %v647 = vmul.f32 %v602, %v632
    %v648 = vmul.f32 %v604, %v635
    %v649 = vmul.f32 %v606, %v638
    %v650 = vmul.f32 %v608, %v641
    %v651 = vmul.f32 %v610, %v644
    %652 = vmatpush.msra.mxu0 0.0
    %653 = vmatpush.msra.mxu0 0.0
    %654 = vmatpush.msra.mxu0 0.0
    %655 = vmatpush.msra.mxu0 0.0
    %656 = vmatpush.msra.mxu0 0.0
    %657 = vmatpush.msra.mxu0 0.0
    %658 = vmatpush.msra.mxu0 0.0
    %659 = vmatpush.msra.mxu0 0.0
    %660 = vmatpush.msra.mxu0 0.0
    %661 = vmatpush.msra.mxu0 0.0
    %662 = vmatpush.msra.mxu0 %v651
    %663 = vmatpush.msra.mxu0 %v650
    %664 = vmatpush.msra.mxu0 %v649
    %665 = vmatpush.msra.mxu0 %v648
    %666 = vmatpush.msra.mxu0 %v647
    %667 = vmatpush.msra.mxu0 %v646
    %668 = vmatmul.f32.gmra.mxu0 %v391
    %v669 = vpop.f32.mrf.mxu0
    %v670 = vadd.f32 0.0, %v669
    %671 = vmatmul.f32.gmra.mxu0 %v394
    %v672 = vpop.f32.mrf.mxu0
    %v673 = vadd.f32 0.0, %v672
    %674 = vdwg.mxu0
    %675 = vmatpush.msra.mxu0 0.0
    %676 = vmatpush.msra.mxu0 0.0
    %677 = vmatpush.msra.mxu0 0.0
    %678 = vmatpush.msra.mxu0 0.0
    %679 = vmatpush.msra.mxu0 0.0
    %680 = vmatpush.msra.mxu0 0.0
    %681 = vmatpush.msra.mxu0 0.0
    %682 = vmatpush.msra.mxu0 0.0
    %683 = vmatpush.msra.mxu0 0.0
    %684 = vmatpush.msra.mxu0 0.0
    %685 = vmatpush.msra.mxu0 %v610
    %686 = vmatpush.msra.mxu0 %v608
    %687 = vmatpush.msra.mxu0 %v606
    %688 = vmatpush.msra.mxu0 %v604
    %689 = vmatpush.msra.mxu0 %v602
    %690 = vmatpush.msra.mxu0 %v600
    %691 = vmatmul.f32.gmra.mxu0 %v391
    %v692 = vpop.f32.mrf.mxu0
    %v693 = vadd.f32 0.0, %v692
    %694 = vmatmul.f32.gmra.mxu0 %v394
    %v695 = vpop.f32.mrf.mxu0
    %v696 = vadd.f32 0.0, %v695
    %697 = vdwg.mxu0
    %v698 = vmax.f32 %v693, 1e-30
    %v699 = vmax.f32 %v696, 1e-30
    %v700 = vrcp.pop %v698
    %v701 = vrcp.pop %v699
    %v702 = vmul.f32 %v670, %v700
    %v703 = vmul.f32 %v673, %v701
    %vm704 = vcmp.lt.s32.totalorder %v88, 8
    %v705 = vsel %vm704, %v702, -1e+30
    %v706 = vsel %vm704, %v703, -1e+30
    %707 = vmax.xlane.f32.xlu0 %v705
    %v708 = vpop.xlane.xlu0 %707
    %709 = vmax.xlane.f32.xlu0 %v706
    %v710 = vpop.xlane.xlu0 %709
    %v711 = vsub.f32 %v705, %v708
    %v712 = vsub.f32 %v706, %v710
    %v713 = vmul.f32 %v711, 1.442695
    %v714 = vpow.pop %v713
    %v715 = vmul.f32 %v712, 1.442695
    %v716 = vpow.pop %v715
    %v717 = vsel %vm704, %v714, 0.0
    %v718 = vsel %vm704, %v716, 0.0
    %719 = vadd.xlane.f32.xlu0 %v717
    %v720 = vpop.xlane.xlu0 %719
    %721 = vadd.xlane.f32.xlu0 %v718
    %v722 = vpop.xlane.xlu0 %721
    %v723 = vlog2.pop %v720
    %v724 = vmul.f32 %v723, 0.6931472
    %v725 = vlog2.pop %v722
    %v726 = vmul.f32 %v725, 0.6931472
    %v727 = vsub.f32 %v711, %v724
    %v728 = vsub.f32 %v712, %v726
    %729 = vst [vmem:[#allocation7] sm:$0xff] %v727
    %730 = vst [vmem:[#allocation7 + $0x8] sm:$0xff] %v728
    // Predicated region
    $region66: #{tpu_custom_call.1} parent=1 // pred_check
      _
    $region67: #{tpu_custom_call.1} parent=1 // pred_check_branch
      %732 = sbr.rel (0) target = $region69
    $region68: #{tpu_custom_call.1} parent=1 // pred_region
      %734 = vsyncadd [#allocation4], 0
      %s735 = sshll.u32 [#allocation7], 4
      %s736 = int_to_ptr.vmem [resolvable:$true] %s735
      %s737 = sshll.u32 %s14, 4
      %s738 = int_to_ptr.hbm [resolvable:$true] %s737
      %743 = dma.vmem_to_hbm [thread:$0]  %s736, 256, %s738, [#allocation4], 128, 128, 8
    $region69: #{tpu_custom_call.1} parent=1 // pred_fallthru
      _
    // Predicated region
    $region70: #{tpu_custom_call.1} parent=1 // pred_check
      _
    $region71: #{tpu_custom_call.1} parent=1 // pred_check_branch
      %745 = sbr.rel (0) target = $region73
    $region72: #{tpu_custom_call.1} parent=1 // pred_region
      %747 = dma.done [#allocation4], 256
    $region73: #{tpu_custom_call.1} parent=1 // pred_fallthru
      _
    %748 = vsyncpa [#allocation3], 1
    %749 = vsyncpa [#allocation6], 1
    %750 = vsyncpa [#allocation4], 1

</llo_original>
